<compile_context>
chip_gen: v6e
topology: v6e:2x2x1
jax: 0.10.0
libtpu: 0.0.40
codegen_flags: <defaults>
</compile_context>

<pallas_src>
import jax
import jax.numpy as jnp
from jax.experimental import pallas as pl
from jax.experimental.pallas import tpu as pltpu


def _blur3x3_kernel(x_ref, o_ref, xp_ref):
    """Depthwise 3x3 binomial blur with reflect padding.

    x_ref:  (B, H, W)       input, B = N*C collapsed
    o_ref:  (B, H*W)        lane-dense output
    xp_ref: (B, H+2, W+2)   VMEM scratch: reflect-padded tile (in-kernel halo)
    """
    B, H, W = x_ref.shape

    x = x_ref[...]  # (B, H, W) f32

    # ---- build the reflect-padded tile in VMEM (no wrapper-side jnp.pad) ----
    # interior
    xp_ref[:, 1:H + 1, 1:W + 1] = x
    # left / right halo columns ('reflect' excludes the edge:
    #   pad col 0 <- col 1, pad col W+1 <- col W-2)
    xp_ref[:, 1:H + 1, 0:1] = x[:, :, 1:2]
    xp_ref[:, 1:H + 1, W + 1:W + 2] = x[:, :, W - 2:W - 1]
    # top / bottom halo rows, copied from already W-padded interior rows so the
    # corners get the double reflection for free.
    xp_ref[:, 0:1, :] = xp_ref[:, 2:3, :]
    xp_ref[:, H + 1:H + 2, :] = xp_ref[:, H - 1:H, :]

    xp = xp_ref[...]  # (B, H+2, W+2) f32

    # ---- separable [1, 2, 1] passes, pure VPU (no MXU) ----
    h = xp[:, :, 0:W] + 2.0 * xp[:, :, 1:W + 1] + xp[:, :, 2:W + 2]    # (B, H+2, W)
    y = h[:, 0:H, :] + 2.0 * h[:, 1:H + 1, :] + h[:, 2:H + 2, :]       # (B, H, W)
    y = y * jnp.float32(1.0 / 16.0)

    # lane-dense store: last dim H*W = 256 -> full-lane, unmasked vst
    o_ref[...] = y.reshape(B, H * W).astype(o_ref.dtype)


def blur_forward(x_nchw):
    """Pallas implementation of Blur.forward (filter2d([1,2,1]^T[1,2,1], normalized))."""
    N, C, H, W = x_nchw.shape
    assert H >= 2 and W >= 2, "reflect padding needs H, W >= 2"
    B = N * C
    orig_dtype = x_nchw.dtype

    x = x_nchw.reshape(B, H, W).astype(jnp.float32)  # bitcast-style reshape + cast

    out_flat = pl.pallas_call(
        _blur3x3_kernel,
        out_shape=jax.ShapeDtypeStruct((B, H * W), jnp.float32),
        grid_spec=pltpu.PrefetchScalarGridSpec(
            num_scalar_prefetch=0,
            grid=(1,),
            in_specs=[pl.BlockSpec((B, H, W), lambda i: (0, 0, 0))],
            out_specs=pl.BlockSpec((B, H * W), lambda i: (0, 0)),
            scratch_shapes=[pltpu.VMEM((B, H + 2, W + 2), jnp.float32)],
        ),
        compiler_params=pltpu.CompilerParams(
            dimension_semantics=("arbitrary",)),
    )(x)

    return out_flat.reshape(N, C, H, W).astype(orig_dtype)


def _reference(x_nchw):
    """Pure-JAX reference: depthwise 3x3 [1,2,1]x[1,2,1]/16 with reflect padding."""
    N, C, H, W = x_nchw.shape
    f = jnp.array([1.0, 2.0, 1.0], dtype=jnp.float32)
    k = f[:, None] * f[None, :]
    k = k / jnp.sum(k)
    xp = jnp.pad(x_nchw.astype(jnp.float32),
                 ((0, 0), (0, 0), (1, 1), (1, 1)), mode="reflect")
    xr = xp.reshape(N * C, 1, H + 2, W + 2)
    y = jax.lax.conv_general_dilated(
        xr, k.reshape(1, 1, 3, 3), window_strides=(1, 1), padding="VALID",
        dimension_numbers=("NCHW", "OIHW", "NCHW"))
    return y.reshape(N, C, H, W)


if __name__ == "__main__":
    # Blur is shape-preserving and parameter-free; small NCHW input.
    N, C, H, W = 2, 4, 16, 16

    key = jax.random.PRNGKey(0)
    x = jax.random.normal(key, (N, C, H, W), dtype=jnp.float32)

    out = blur_forward(x)
    out = jax.block_until_ready(out)

    ref = _reference(x)
    assert out.shape == (N, C, H, W)
    assert jnp.allclose(out, ref, atol=1e-4, rtol=1e-4)

    print("KERNEL_OK")
</pallas_src>

<mosaic_0001>
module attributes {stable_mosaic.version = 11 : i64} {
  func.func @_blur3x3_kernel(%arg0: i32, %arg1: memref<8x16x16xf32, #tpu.memory_space<vmem>>, %arg2: memref<8x256xf32, #tpu.memory_space<vmem>>, %arg3: memref<8x18x18xf32, #tpu.memory_space<vmem>>) attributes {dimension_semantics = [#tpu.dimension_semantics<arbitrary>], iteration_bounds = array<i64: 1>, scalar_prefetch = 0 : i64, scratch_operands = 1 : i64, tpu.core_type = #tpu.core_type<tc>, window_params = [{pipeline_mode = #tpu.pipeline_mode<synchronous>, transform_indices = @transform_0, window_bounds = array<i64: 8, 16, 16>}, {pipeline_mode = #tpu.pipeline_mode<synchronous>, transform_indices = @transform_1, window_bounds = array<i64: 8, 256>}]} {
    %c0 = arith.constant 0 : index
    %c0_0 = arith.constant 0 : index
    %c0_1 = arith.constant 0 : index
    %0 = vector.load %arg1[%c0, %c0_0, %c0_1] : memref<8x16x16xf32, #tpu.memory_space<vmem>>, vector<8x16x16xf32>
    %c0_2 = arith.constant 0 : index
    %c1 = arith.constant 1 : index
    %c1_3 = arith.constant 1 : index
    %1 = vector.load %arg3[%c0_2, %c1, %c1_3] : memref<8x18x18xf32, #tpu.memory_space<vmem>>, vector<8x16x16xf32>
    tpu.vector_store %arg3[%c0_2, %c1, %c1_3], %0 {strides = array<i32>} : memref<8x18x18xf32, #tpu.memory_space<vmem>>, vector<8x16x16xf32>,
    %2 = vector.extract_strided_slice %0 {offsets = [0, 0, 1], sizes = [8, 16, 1], strides = [1, 1, 1]} : vector<8x16x16xf32> to vector<8x16x1xf32>
    %c0_4 = arith.constant 0 : index
    %c1_5 = arith.constant 1 : index
    %c0_6 = arith.constant 0 : index
    %3 = vector.load %arg3[%c0_4, %c1_5, %c0_6] : memref<8x18x18xf32, #tpu.memory_space<vmem>>, vector<8x16x1xf32>
    tpu.vector_store %arg3[%c0_4, %c1_5, %c0_6], %2 {strides = array<i32>} : memref<8x18x18xf32, #tpu.memory_space<vmem>>, vector<8x16x1xf32>,
    %4 = vector.extract_strided_slice %0 {offsets = [0, 0, 14], sizes = [8, 16, 1], strides = [1, 1, 1]} : vector<8x16x16xf32> to vector<8x16x1xf32>
    %c0_7 = arith.constant 0 : index
    %c1_8 = arith.constant 1 : index
    %c17 = arith.constant 17 : index
    %5 = vector.load %arg3[%c0_7, %c1_8, %c17] : memref<8x18x18xf32, #tpu.memory_space<vmem>>, vector<8x16x1xf32>
    tpu.vector_store %arg3[%c0_7, %c1_8, %c17], %4 {strides = array<i32>} : memref<8x18x18xf32, #tpu.memory_space<vmem>>, vector<8x16x1xf32>,
    %c0_9 = arith.constant 0 : index
    %c2 = arith.constant 2 : index
    %c0_10 = arith.constant 0 : index
    %6 = vector.load %arg3[%c0_9, %c2, %c0_10] : memref<8x18x18xf32, #tpu.memory_space<vmem>>, vector<8x1x18xf32>
    %c0_11 = arith.constant 0 : index
    %c0_12 = arith.constant 0 : index
    %c0_13 = arith.constant 0 : index
    %7 = vector.load %arg3[%c0_11, %c0_12, %c0_13] : memref<8x18x18xf32, #tpu.memory_space<vmem>>, vector<8x1x18xf32>
    tpu.vector_store %arg3[%c0_11, %c0_12, %c0_13], %6 {strides = array<i32>} : memref<8x18x18xf32, #tpu.memory_space<vmem>>, vector<8x1x18xf32>,
    %c0_14 = arith.constant 0 : index
    %c15 = arith.constant 15 : index
    %c0_15 = arith.constant 0 : index
    %8 = vector.load %arg3[%c0_14, %c15, %c0_15] : memref<8x18x18xf32, #tpu.memory_space<vmem>>, vector<8x1x18xf32>
    %c0_16 = arith.constant 0 : index
    %c17_17 = arith.constant 17 : index
    %c0_18 = arith.constant 0 : index
    %9 = vector.load %arg3[%c0_16, %c17_17, %c0_18] : memref<8x18x18xf32, #tpu.memory_space<vmem>>, vector<8x1x18xf32>
    tpu.vector_store %arg3[%c0_16, %c17_17, %c0_18], %8 {strides = array<i32>} : memref<8x18x18xf32, #tpu.memory_space<vmem>>, vector<8x1x18xf32>,
    %c0_19 = arith.constant 0 : index
    %c0_20 = arith.constant 0 : index
    %c0_21 = arith.constant 0 : index
    %10 = vector.load %arg3[%c0_19, %c0_20, %c0_21] : memref<8x18x18xf32, #tpu.memory_space<vmem>>, vector<8x18x18xf32>
    %11 = vector.extract_strided_slice %10 {offsets = [0, 0, 0], sizes = [8, 18, 16], strides = [1, 1, 1]} : vector<8x18x18xf32> to vector<8x18x16xf32>
    %12 = vector.extract_strided_slice %10 {offsets = [0, 0, 1], sizes = [8, 18, 16], strides = [1, 1, 1]} : vector<8x18x18xf32> to vector<8x18x16xf32>
    %cst = arith.constant 2.000000e+00 : f32
    %13 = vector.broadcast %cst : f32 to vector<8x18x16xf32>
    %14 = arith.mulf %13, %12 : vector<8x18x16xf32>
    %15 = arith.addf %11, %14 : vector<8x18x16xf32>
    %16 = vector.extract_strided_slice %10 {offsets = [0, 0, 2], sizes = [8, 18, 16], strides = [1, 1, 1]} : vector<8x18x18xf32> to vector<8x18x16xf32>
    %17 = arith.addf %15, %16 : vector<8x18x16xf32>
    %18 = vector.extract_strided_slice %17 {offsets = [0, 0, 0], sizes = [8, 16, 16], strides = [1, 1, 1]} : vector<8x18x16xf32> to vector<8x16x16xf32>
    %19 = vector.extract_strided_slice %17 {offsets = [0, 1, 0], sizes = [8, 16, 16], strides = [1, 1, 1]} : vector<8x18x16xf32> to vector<8x16x16xf32>
    %cst_22 = arith.constant 2.000000e+00 : f32
    %20 = vector.broadcast %cst_22 : f32 to vector<8x16x16xf32>
    %21 = arith.mulf %20, %19 : vector<8x16x16xf32>
    %22 = arith.addf %18, %21 : vector<8x16x16xf32>
    %23 = vector.extract_strided_slice %17 {offsets = [0, 2, 0], sizes = [8, 16, 16], strides = [1, 1, 1]} : vector<8x18x16xf32> to vector<8x16x16xf32>
    %24 = arith.addf %22, %23 : vector<8x16x16xf32>
    %cst_23 = arith.constant 6.250000e-02 : f32
    %25 = vector.broadcast %cst_23 : f32 to vector<8x16x16xf32>
    %26 = arith.mulf %24, %25 : vector<8x16x16xf32>
    %27 = vector.shape_cast %26 : vector<8x16x16xf32> to vector<8x256xf32>
    %c0_24 = arith.constant 0 : index
    %c0_25 = arith.constant 0 : index
    %28 = vector.load %arg2[%c0_24, %c0_25] : memref<8x256xf32, #tpu.memory_space<vmem>>, vector<8x256xf32>
    tpu.vector_store %arg2[%c0_24, %c0_25], %27 {strides = array<i32>} : memref<8x256xf32, #tpu.memory_space<vmem>>, vector<8x256xf32>,
    return
  }
  func.func @transform_0(%arg0: i32) -> (i32, i32, i32) {
    %c0_i32 = arith.constant 0 : i32
    %c0_i32_0 = arith.constant 0 : i32
    %c0_i32_1 = arith.constant 0 : i32
    %c0_i32_2 = arith.constant 0 : i32
    return %c0_i32, %c0_i32_0, %c0_i32_1 : i32, i32, i32
  }
  func.func @transform_1(%arg0: i32) -> (i32, i32) {
    %c0_i32 = arith.constant 0 : i32
    %c0_i32_0 = arith.constant 0 : i32
    %c0_i32_1 = arith.constant 0 : i32
    return %c0_i32, %c0_i32_0 : i32, i32
  }
}

</mosaic_0001>

<llo_original>
// kernel: tpu_custom_call.1
$region0: #{tpu_custom_call.1}
  #allocation0 [shape = 'u32[]', space=smem, size = 0x4, offset = 0x4, fixed_abs, tag = 'smem constant byte address 0x4 - core index']
  #allocation1 [shape = 'u32[144,128]{1,0:T(1,128)}', space=vmem, size = 0x12000, scoped, tag = 'internal scratch']
  #allocation2 [shape = 'f32[8,18,18]{2,1,0:T(8,128)}', space=vmem, size = 0x18000, scoped, tag = 'scratch operand']
  %s0 = inlined_call_operand.hbm [shape: f32[8,16,16], index: 0, kind: input, shape index: {}]
  %s1 = inlined_call_operand.hbm [shape: f32[8,256], index: 1, kind: output, shape index: {}]
  %s2 = sld [smem:[#allocation0]]
  $region18: #{tpu_custom_call.1} parent=0
    _
  %s4 = ssub.s32 1, %s2
  %s5 = scalar_select 0, %s4, %s2
  $region1: #{tpu_custom_call.1} parent=0
    #allocation3 [shape = 'u8[65536]{0}', space=vmem, size = 0x10000, scoped, tag = 'input window, operand 0, single buffered']
    #allocation4 [shape = 's32[1]{0}', space=sflag, size = 0x4, scoped, tag = 'scoped memory for tpu_custom_call.1']
    #allocation5 [shape = 's32[1]{0}', space=sflag, size = 0x4, scoped, tag = 'scoped memory for tpu_custom_call.1']
    #allocation6 [shape = 'u8[8192]{0}', space=vmem, size = 0x2000, scoped, tag = 'output window, operand 0, single buffered']
    %6 = vsyncpa [#allocation4], 0
    %7 = vsyncpa [#allocation5], 0
    // Predicated region
    $region2: #{tpu_custom_call.1} parent=1 // pred_check
      _
    $region3: #{tpu_custom_call.1} parent=1 // pred_check_branch
      %9 = sbr.rel (0) target = $region5
    $region4: #{tpu_custom_call.1} parent=1 // pred_region
      %s11 = ssub.s32 2048, 2048
      %12 = vsyncadd [#allocation4], %s11
      %s13 = sshll.u32 [#allocation3], 4
      %s14 = int_to_ptr.vmem [resolvable:$true] %s13
      %19 = dma.hbm_to_vmem [thread:$0]  %s0, 2048, %s14, [#allocation4], 128, 128, 8
    $region5: #{tpu_custom_call.1} parent=1 // pred_fallthru
      _
    // Predicated region
    $region6: #{tpu_custom_call.1} parent=1 // pred_check
      _
    $region7: #{tpu_custom_call.1} parent=1 // pred_check_branch
      %21 = sbr.rel (0) target = $region9
    $region8: #{tpu_custom_call.1} parent=1 // pred_region
      %22 = dma.done [#allocation4], 2048
    $region9: #{tpu_custom_call.1} parent=1 // pred_fallthru
      _
    %v23 = vld [vmem:[#allocation3] sm:$0xff]
    %v24 = vld [vmem:[#allocation3 + $0x8] sm:$0xff]
    %v25 = vld [vmem:[#allocation3 + $0x10] sm:$0xff]
    %v26 = vld [vmem:[#allocation3 + $0x18] sm:$0xff]
    %v27 = vld [vmem:[#allocation3 + $0x20] sm:$0xff]
    %v28 = vld [vmem:[#allocation3 + $0x28] sm:$0xff]
    %v29 = vld [vmem:[#allocation3 + $0x30] sm:$0xff]
    %v30 = vld [vmem:[#allocation3 + $0x38] sm:$0xff]
    %v31 = vld [vmem:[#allocation3 + $0x40] sm:$0xff]
    %v32 = vld [vmem:[#allocation3 + $0x48] sm:$0xff]
    %v33 = vld [vmem:[#allocation3 + $0x50] sm:$0xff]
    %v34 = vld [vmem:[#allocation3 + $0x58] sm:$0xff]
    %v35 = vld [vmem:[#allocation3 + $0x60] sm:$0xff]
    %v36 = vld [vmem:[#allocation3 + $0x68] sm:$0xff]
    %v37 = vld [vmem:[#allocation3 + $0x70] sm:$0xff]
    %v38 = vld [vmem:[#allocation3 + $0x78] sm:$0xff]
    %55 = vrot.lane.b32.xlu0 %v23, 1
    %v56 = vpop.permute.xlu0 %55
    %57 = vrot.lane.b32.xlu0 %v24, 1
    %v58 = vpop.permute.xlu0 %57
    %59 = vrot.lane.b32.xlu0 %v25, 1
    %v60 = vpop.permute.xlu0 %59
    %61 = vrot.lane.b32.xlu0 %v26, 1
    %v62 = vpop.permute.xlu0 %61
    %63 = vrot.lane.b32.xlu0 %v27, 1
    %v64 = vpop.permute.xlu0 %63
    %65 = vrot.lane.b32.xlu0 %v28, 1
    %v66 = vpop.permute.xlu0 %65
    %67 = vrot.lane.b32.xlu0 %v29, 1
    %v68 = vpop.permute.xlu0 %67
    %69 = vrot.lane.b32.xlu0 %v30, 1
    %v70 = vpop.permute.xlu0 %69
    %71 = vrot.lane.b32.xlu0 %v31, 1
    %v72 = vpop.permute.xlu0 %71
    %73 = vrot.lane.b32.xlu0 %v32, 1
    %v74 = vpop.permute.xlu0 %73
    %75 = vrot.lane.b32.xlu0 %v33, 1
    %v76 = vpop.permute.xlu0 %75
    %77 = vrot.lane.b32.xlu0 %v34, 1
    %v78 = vpop.permute.xlu0 %77
    %79 = vrot.lane.b32.xlu0 %v35, 1
    %v80 = vpop.permute.xlu0 %79
    %81 = vrot.lane.b32.xlu0 %v36, 1
    %v82 = vpop.permute.xlu0 %81
    %83 = vrot.lane.b32.xlu0 %v37, 1
    %v84 = vpop.permute.xlu0 %83
    %85 = vrot.lane.b32.xlu0 %v38, 1
    %v86 = vpop.permute.xlu0 %85
    %vm103 = vcmask 138248
    %104 = vst.msk [vmem:[#allocation2 + $0x1] sm:$0xff] %vm103, %v56
    %105 = vst.msk [vmem:[#allocation2 + $0x9] sm:$0xff] %vm103, %v58
    %106 = vst.msk [vmem:[#allocation2 + $0x19] sm:$0xff] %vm103, %v60
    %107 = vst.msk [vmem:[#allocation2 + $0x21] sm:$0xff] %vm103, %v62
    %108 = vst.msk [vmem:[#allocation2 + $0x31] sm:$0xff] %vm103, %v64
    %109 = vst.msk [vmem:[#allocation2 + $0x39] sm:$0xff] %vm103, %v66
    %110 = vst.msk [vmem:[#allocation2 + $0x49] sm:$0xff] %vm103, %v68
    %111 = vst.msk [vmem:[#allocation2 + $0x51] sm:$0xff] %vm103, %v70
    %112 = vst.msk [vmem:[#allocation2 + $0x61] sm:$0xff] %vm103, %v72
    %113 = vst.msk [vmem:[#allocation2 + $0x69] sm:$0xff] %vm103, %v74
    %114 = vst.msk [vmem:[#allocation2 + $0x79] sm:$0xff] %vm103, %v76
    %115 = vst.msk [vmem:[#allocation2 + $0x81] sm:$0xff] %vm103, %v78
    %116 = vst.msk [vmem:[#allocation2 + $0x91] sm:$0xff] %vm103, %v80
    %117 = vst.msk [vmem:[#allocation2 + $0x99] sm:$0xff] %vm103, %v82
    %118 = vst.msk [vmem:[#allocation2 + $0xa9] sm:$0xff] %vm103, %v84
    %119 = vst.msk [vmem:[#allocation2 + $0xb1] sm:$0xff] %vm103, %v86
    %120 = vrot.lane.b32.xlu0 %v23, 127
    %v121 = vpop.permute.xlu0 %120
    %122 = vrot.lane.b32.xlu0 %v24, 127
    %v123 = vpop.permute.xlu0 %122
    %124 = vrot.lane.b32.xlu0 %v25, 127
    %v125 = vpop.permute.xlu0 %124
    %126 = vrot.lane.b32.xlu0 %v26, 127
    %v127 = vpop.permute.xlu0 %126
    %128 = vrot.lane.b32.xlu0 %v27, 127
    %v129 = vpop.permute.xlu0 %128
    %130 = vrot.lane.b32.xlu0 %v28, 127
    %v131 = vpop.permute.xlu0 %130
    %132 = vrot.lane.b32.xlu0 %v29, 127
    %v133 = vpop.permute.xlu0 %132
    %134 = vrot.lane.b32.xlu0 %v30, 127
    %v135 = vpop.permute.xlu0 %134
    %136 = vrot.lane.b32.xlu0 %v31, 127
    %v137 = vpop.permute.xlu0 %136
    %138 = vrot.lane.b32.xlu0 %v32, 127
    %v139 = vpop.permute.xlu0 %138
    %140 = vrot.lane.b32.xlu0 %v33, 127
    %v141 = vpop.permute.xlu0 %140
    %142 = vrot.lane.b32.xlu0 %v34, 127
    %v143 = vpop.permute.xlu0 %142
    %144 = vrot.lane.b32.xlu0 %v35, 127
    %v145 = vpop.permute.xlu0 %144
    %146 = vrot.lane.b32.xlu0 %v36, 127
    %v147 = vpop.permute.xlu0 %146
    %148 = vrot.lane.b32.xlu0 %v37, 127
    %v149 = vpop.permute.xlu0 %148
    %150 = vrot.lane.b32.xlu0 %v38, 127
    %v151 = vpop.permute.xlu0 %150
    %vm168 = vcmask 7168
    %169 = vst.msk [vmem:[#allocation2 + $0x1] sm:$0xff] %vm168, %v121
    %170 = vst.msk [vmem:[#allocation2 + $0x9] sm:$0xff] %vm168, %v123
    %171 = vst.msk [vmem:[#allocation2 + $0x19] sm:$0xff] %vm168, %v125
    %172 = vst.msk [vmem:[#allocation2 + $0x21] sm:$0xff] %vm168, %v127
    %173 = vst.msk [vmem:[#allocation2 + $0x31] sm:$0xff] %vm168, %v129
    %174 = vst.msk [vmem:[#allocation2 + $0x39] sm:$0xff] %vm168, %v131
    %175 = vst.msk [vmem:[#allocation2 + $0x49] sm:$0xff] %vm168, %v133
    %176 = vst.msk [vmem:[#allocation2 + $0x51] sm:$0xff] %vm168, %v135
    %177 = vst.msk [vmem:[#allocation2 + $0x61] sm:$0xff] %vm168, %v137
    %178 = vst.msk [vmem:[#allocation2 + $0x69] sm:$0xff] %vm168, %v139
    %179 = vst.msk [vmem:[#allocation2 + $0x79] sm:$0xff] %vm168, %v141
    %180 = vst.msk [vmem:[#allocation2 + $0x81] sm:$0xff] %vm168, %v143
    %181 = vst.msk [vmem:[#allocation2 + $0x91] sm:$0xff] %vm168, %v145
    %182 = vst.msk [vmem:[#allocation2 + $0x99] sm:$0xff] %vm168, %v147
    %183 = vst.msk [vmem:[#allocation2 + $0xa9] sm:$0xff] %vm168, %v149
    %184 = vst.msk [vmem:[#allocation2 + $0xb1] sm:$0xff] %vm168, %v151
    %185 = vrot.lane.b32.xlu0 %v23, 3
    %v186 = vpop.permute.xlu0 %185
    %187 = vrot.lane.b32.xlu0 %v24, 3
    %v188 = vpop.permute.xlu0 %187
    %189 = vrot.lane.b32.xlu0 %v25, 3
    %v190 = vpop.permute.xlu0 %189
    %191 = vrot.lane.b32.xlu0 %v26, 3
    %v192 = vpop.permute.xlu0 %191
    %193 = vrot.lane.b32.xlu0 %v27, 3
    %v194 = vpop.permute.xlu0 %193
    %195 = vrot.lane.b32.xlu0 %v28, 3
    %v196 = vpop.permute.xlu0 %195
    %197 = vrot.lane.b32.xlu0 %v29, 3
    %v198 = vpop.permute.xlu0 %197
    %199 = vrot.lane.b32.xlu0 %v30, 3
    %v200 = vpop.permute.xlu0 %199
    %201 = vrot.lane.b32.xlu0 %v31, 3
    %v202 = vpop.permute.xlu0 %201
    %203 = vrot.lane.b32.xlu0 %v32, 3
    %v204 = vpop.permute.xlu0 %203
    %205 = vrot.lane.b32.xlu0 %v33, 3
    %v206 = vpop.permute.xlu0 %205
    %207 = vrot.lane.b32.xlu0 %v34, 3
    %v208 = vpop.permute.xlu0 %207
    %209 = vrot.lane.b32.xlu0 %v35, 3
    %v210 = vpop.permute.xlu0 %209
    %211 = vrot.lane.b32.xlu0 %v36, 3
    %v212 = vpop.permute.xlu0 %211
    %213 = vrot.lane.b32.xlu0 %v37, 3
    %v214 = vpop.permute.xlu0 %213
    %215 = vrot.lane.b32.xlu0 %v38, 3
    %v216 = vpop.permute.xlu0 %215
    %vm233 = vcmask 146568
    %234 = vst.msk [vmem:[#allocation2 + $0x1] sm:$0xff] %vm233, %v186
    %235 = vst.msk [vmem:[#allocation2 + $0x9] sm:$0xff] %vm233, %v188
    %236 = vst.msk [vmem:[#allocation2 + $0x19] sm:$0xff] %vm233, %v190
    %237 = vst.msk [vmem:[#allocation2 + $0x21] sm:$0xff] %vm233, %v192
    %238 = vst.msk [vmem:[#allocation2 + $0x31] sm:$0xff] %vm233, %v194
    %239 = vst.msk [vmem:[#allocation2 + $0x39] sm:$0xff] %vm233, %v196
    %240 = vst.msk [vmem:[#allocation2 + $0x49] sm:$0xff] %vm233, %v198
    %241 = vst.msk [vmem:[#allocation2 + $0x51] sm:$0xff] %vm233, %v200
    %242 = vst.msk [vmem:[#allocation2 + $0x61] sm:$0xff] %vm233, %v202
    %243 = vst.msk [vmem:[#allocation2 + $0x69] sm:$0xff] %vm233, %v204
    %244 = vst.msk [vmem:[#allocation2 + $0x79] sm:$0xff] %vm233, %v206
    %245 = vst.msk [vmem:[#allocation2 + $0x81] sm:$0xff] %vm233, %v208
    %246 = vst.msk [vmem:[#allocation2 + $0x91] sm:$0xff] %vm233, %v210
    %247 = vst.msk [vmem:[#allocation2 + $0x99] sm:$0xff] %vm233, %v212
    %248 = vst.msk [vmem:[#allocation2 + $0xa9] sm:$0xff] %vm233, %v214
    %249 = vst.msk [vmem:[#allocation2 + $0xb1] sm:$0xff] %vm233, %v216
    %v250 = vld [vmem:[#allocation2 + $0x2] sm:$0x1]
    %v251 = vld [vmem:[#allocation2 + $0x1a] sm:$0x1]
    %v252 = vld [vmem:[#allocation2 + $0x32] sm:$0x1]
    %v253 = vld [vmem:[#allocation2 + $0x4a] sm:$0x1]
    %v254 = vld [vmem:[#allocation2 + $0x62] sm:$0x1]
    %v255 = vld [vmem:[#allocation2 + $0x7a] sm:$0x1]
    %v256 = vld [vmem:[#allocation2 + $0x92] sm:$0x1]
    %v257 = vld [vmem:[#allocation2 + $0xaa] sm:$0x1]
    %vm258 = vcmask 139264
    %259 = vst.msk [vmem:[#allocation2] sm:$0x1] %vm258, %v250
    %260 = vst.msk [vmem:[#allocation2 + $0x18] sm:$0x1] %vm258, %v251
    %261 = vst.msk [vmem:[#allocation2 + $0x30] sm:$0x1] %vm258, %v252
    %262 = vst.msk [vmem:[#allocation2 + $0x48] sm:$0x1] %vm258, %v253
    %263 = vst.msk [vmem:[#allocation2 + $0x60] sm:$0x1] %vm258, %v254
    %264 = vst.msk [vmem:[#allocation2 + $0x78] sm:$0x1] %vm258, %v255
    %265 = vst.msk [vmem:[#allocation2 + $0x90] sm:$0x1] %vm258, %v256
    %266 = vst.msk [vmem:[#allocation2 + $0xa8] sm:$0x1] %vm258, %v257
    %v267 = vld [vmem:[#allocation2 + $0xf] sm:$0x1]
    %v268 = vld [vmem:[#allocation2 + $0x27] sm:$0x1]
    %v269 = vld [vmem:[#allocation2 + $0x3f] sm:$0x1]
    %v270 = vld [vmem:[#allocation2 + $0x57] sm:$0x1]
    %v271 = vld [vmem:[#allocation2 + $0x6f] sm:$0x1]
    %v272 = vld [vmem:[#allocation2 + $0x87] sm:$0x1]
    %v273 = vld [vmem:[#allocation2 + $0x9f] sm:$0x1]
    %v274 = vld [vmem:[#allocation2 + $0xb7] sm:$0x1]
    %275 = vst.msk [vmem:[#allocation2 + $0x11] sm:$0x1] %vm258, %v267
    %276 = vst.msk [vmem:[#allocation2 + $0x29] sm:$0x1] %vm258, %v268
    %277 = vst.msk [vmem:[#allocation2 + $0x41] sm:$0x1] %vm258, %v269
    %278 = vst.msk [vmem:[#allocation2 + $0x59] sm:$0x1] %vm258, %v270
    %279 = vst.msk [vmem:[#allocation2 + $0x71] sm:$0x1] %vm258, %v271
    %280 = vst.msk [vmem:[#allocation2 + $0x89] sm:$0x1] %vm258, %v272
    %281 = vst.msk [vmem:[#allocation2 + $0xa1] sm:$0x1] %vm258, %v273
    %282 = vst.msk [vmem:[#allocation2 + $0xb9] sm:$0x1] %vm258, %v274
    %v283 = vld [vmem:[#allocation2] sm:$0xff]
    %v284 = vld [vmem:[#allocation2 + $0x8] sm:$0xff]
    %v285 = vld [vmem:[#allocation2 + $0x10] sm:$0x3]
    %v286 = vld [vmem:[#allocation2 + $0x18] sm:$0xff]
    %v287 = vld [vmem:[#allocation2 + $0x20] sm:$0xff]
    %v288 = vld [vmem:[#allocation2 + $0x28] sm:$0x3]
    %v289 = vld [vmem:[#allocation2 + $0x30] sm:$0xff]
    %v290 = vld [vmem:[#allocation2 + $0x38] sm:$0xff]
    %v291 = vld [vmem:[#allocation2 + $0x40] sm:$0x3]
    %v292 = vld [vmem:[#allocation2 + $0x48] sm:$0xff]
    %v293 = vld [vmem:[#allocation2 + $0x50] sm:$0xff]
    %v294 = vld [vmem:[#allocation2 + $0x58] sm:$0x3]
    %v295 = vld [vmem:[#allocation2 + $0x60] sm:$0xff]
    %v296 = vld [vmem:[#allocation2 + $0x68] sm:$0xff]
    %v297 = vld [vmem:[#allocation2 + $0x70] sm:$0x3]
    %v298 = vld [vmem:[#allocation2 + $0x78] sm:$0xff]
    %v299 = vld [vmem:[#allocation2 + $0x80] sm:$0xff]
    %v300 = vld [vmem:[#allocation2 + $0x88] sm:$0x3]
    %v301 = vld [vmem:[#allocation2 + $0x90] sm:$0xff]
    %v302 = vld [vmem:[#allocation2 + $0x98] sm:$0xff]
    %v303 = vld [vmem:[#allocation2 + $0xa0] sm:$0x3]
    %v304 = vld [vmem:[#allocation2 + $0xa8] sm:$0xff]
    %v305 = vld [vmem:[#allocation2 + $0xb0] sm:$0xff]
    %v306 = vld [vmem:[#allocation2 + $0xb8] sm:$0x3]
    %v307 = vmul.f32 %v283, 2.0
    %v308 = vmul.f32 %v284, 2.0
    %v309 = vmul.f32 %v285, 2.0
    %v310 = vmul.f32 %v286, 2.0
    %v311 = vmul.f32 %v287, 2.0
    %v312 = vmul.f32 %v288, 2.0
    %v313 = vmul.f32 %v289, 2.0
    %v314 = vmul.f32 %v290, 2.0
    %v315 = vmul.f32 %v291, 2.0
    %v316 = vmul.f32 %v292, 2.0
    %v317 = vmul.f32 %v293, 2.0
    %v318 = vmul.f32 %v294, 2.0
    %v319 = vmul.f32 %v295, 2.0
    %v320 = vmul.f32 %v296, 2.0
    %v321 = vmul.f32 %v297, 2.0
    %v322 = vmul.f32 %v298, 2.0
    %v323 = vmul.f32 %v299, 2.0
    %v324 = vmul.f32 %v300, 2.0
    %v325 = vmul.f32 %v301, 2.0
    %v326 = vmul.f32 %v302, 2.0
    %v327 = vmul.f32 %v303, 2.0
    %v328 = vmul.f32 %v304, 2.0
    %v329 = vmul.f32 %v305, 2.0
    %v330 = vmul.f32 %v306, 2.0
    %355 = vrot.lane.b32.xlu0 %v307, 127
    %v356 = vpop.permute.xlu0 %355
    %357 = vrot.lane.b32.xlu0 %v308, 127
    %v358 = vpop.permute.xlu0 %357
    %359 = vrot.lane.b32.xlu0 %v309, 127
    %v360 = vpop.permute.xlu0 %359
    %361 = vrot.lane.b32.xlu0 %v310, 127
    %v362 = vpop.permute.xlu0 %361
    %363 = vrot.lane.b32.xlu0 %v311, 127
    %v364 = vpop.permute.xlu0 %363
    %365 = vrot.lane.b32.xlu0 %v312, 127
    %v366 = vpop.permute.xlu0 %365
    %367 = vrot.lane.b32.xlu0 %v313, 127
    %v368 = vpop.permute.xlu0 %367
    %369 = vrot.lane.b32.xlu0 %v314, 127
    %v370 = vpop.permute.xlu0 %369
    %371 = vrot.lane.b32.xlu0 %v315, 127
    %v372 = vpop.permute.xlu0 %371
    %373 = vrot.lane.b32.xlu0 %v316, 127
    %v374 = vpop.permute.xlu0 %373
    %375 = vrot.lane.b32.xlu0 %v317, 127
    %v376 = vpop.permute.xlu0 %375
    %377 = vrot.lane.b32.xlu0 %v318, 127
    %v378 = vpop.permute.xlu0 %377
    %379 = vrot.lane.b32.xlu0 %v319, 127
    %v380 = vpop.permute.xlu0 %379
    %381 = vrot.lane.b32.xlu0 %v320, 127
    %v382 = vpop.permute.xlu0 %381
    %383 = vrot.lane.b32.xlu0 %v321, 127
    %v384 = vpop.permute.xlu0 %383
    %385 = vrot.lane.b32.xlu0 %v322, 127
    %v386 = vpop.permute.xlu0 %385
    %387 = vrot.lane.b32.xlu0 %v323, 127
    %v388 = vpop.permute.xlu0 %387
    %389 = vrot.lane.b32.xlu0 %v324, 127
    %v390 = vpop.permute.xlu0 %389
    %391 = vrot.lane.b32.xlu0 %v325, 127
    %v392 = vpop.permute.xlu0 %391
    %393 = vrot.lane.b32.xlu0 %v326, 127
    %v394 = vpop.permute.xlu0 %393
    %395 = vrot.lane.b32.xlu0 %v327, 127
    %v396 = vpop.permute.xlu0 %395
    %397 = vrot.lane.b32.xlu0 %v328, 127
    %v398 = vpop.permute.xlu0 %397
    %399 = vrot.lane.b32.xlu0 %v329, 127
    %v400 = vpop.permute.xlu0 %399
    %401 = vrot.lane.b32.xlu0 %v330, 127
    %v402 = vpop.permute.xlu0 %401
    %v427 = vadd.f32 %v283, %v356
    %v428 = vadd.f32 %v284, %v358
    %v429 = vadd.f32 %v285, %v360
    %v430 = vadd.f32 %v286, %v362
    %v431 = vadd.f32 %v287, %v364
    %v432 = vadd.f32 %v288, %v366
    %v433 = vadd.f32 %v289, %v368
    %v434 = vadd.f32 %v290, %v370
    %v435 = vadd.f32 %v291, %v372
    %v436 = vadd.f32 %v292, %v374
    %v437 = vadd.f32 %v293, %v376
    %v438 = vadd.f32 %v294, %v378
    %v439 = vadd.f32 %v295, %v380
    %v440 = vadd.f32 %v296, %v382
    %v441 = vadd.f32 %v297, %v384
    %v442 = vadd.f32 %v298, %v386
    %v443 = vadd.f32 %v299, %v388
    %v444 = vadd.f32 %v300, %v390
    %v445 = vadd.f32 %v301, %v392
    %v446 = vadd.f32 %v302, %v394
    %v447 = vadd.f32 %v303, %v396
    %v448 = vadd.f32 %v304, %v398
    %v449 = vadd.f32 %v305, %v400
    %v450 = vadd.f32 %v306, %v402
    %475 = vrot.lane.b32.xlu0 %v283, 126
    %v476 = vpop.permute.xlu0 %475
    %477 = vrot.lane.b32.xlu0 %v284, 126
    %v478 = vpop.permute.xlu0 %477
    %479 = vrot.lane.b32.xlu0 %v285, 126
    %v480 = vpop.permute.xlu0 %479
    %481 = vrot.lane.b32.xlu0 %v286, 126
    %v482 = vpop.permute.xlu0 %481
    %483 = vrot.lane.b32.xlu0 %v287, 126
    %v484 = vpop.permute.xlu0 %483
    %485 = vrot.lane.b32.xlu0 %v288, 126
    %v486 = vpop.permute.xlu0 %485
    %487 = vrot.lane.b32.xlu0 %v289, 126
    %v488 = vpop.permute.xlu0 %487
    %489 = vrot.lane.b32.xlu0 %v290, 126
    %v490 = vpop.permute.xlu0 %489
    %491 = vrot.lane.b32.xlu0 %v291, 126
    %v492 = vpop.permute.xlu0 %491
    %493 = vrot.lane.b32.xlu0 %v292, 126
    %v494 = vpop.permute.xlu0 %493
    %495 = vrot.lane.b32.xlu0 %v293, 126
    %v496 = vpop.permute.xlu0 %495
    %497 = vrot.lane.b32.xlu0 %v294, 126
    %v498 = vpop.permute.xlu0 %497
    %499 = vrot.lane.b32.xlu0 %v295, 126
    %v500 = vpop.permute.xlu0 %499
    %501 = vrot.lane.b32.xlu0 %v296, 126
    %v502 = vpop.permute.xlu0 %501
    %503 = vrot.lane.b32.xlu0 %v297, 126
    %v504 = vpop.permute.xlu0 %503
    %505 = vrot.lane.b32.xlu0 %v298, 126
    %v506 = vpop.permute.xlu0 %505
    %507 = vrot.lane.b32.xlu0 %v299, 126
    %v508 = vpop.permute.xlu0 %507
    %509 = vrot.lane.b32.xlu0 %v300, 126
    %v510 = vpop.permute.xlu0 %509
    %511 = vrot.lane.b32.xlu0 %v301, 126
    %v512 = vpop.permute.xlu0 %511
    %513 = vrot.lane.b32.xlu0 %v302, 126
    %v514 = vpop.permute.xlu0 %513
    %515 = vrot.lane.b32.xlu0 %v303, 126
    %v516 = vpop.permute.xlu0 %515
    %517 = vrot.lane.b32.xlu0 %v304, 126
    %v518 = vpop.permute.xlu0 %517
    %519 = vrot.lane.b32.xlu0 %v305, 126
    %v520 = vpop.permute.xlu0 %519
    %521 = vrot.lane.b32.xlu0 %v306, 126
    %v522 = vpop.permute.xlu0 %521
    %v547 = vadd.f32 %v427, %v476
    %v548 = vadd.f32 %v428, %v478
    %v549 = vadd.f32 %v429, %v480
    %v550 = vadd.f32 %v430, %v482
    %v551 = vadd.f32 %v431, %v484
    %v552 = vadd.f32 %v432, %v486
    %v553 = vadd.f32 %v433, %v488
    %v554 = vadd.f32 %v434, %v490
    %v555 = vadd.f32 %v435, %v492
    %v556 = vadd.f32 %v436, %v494
    %v557 = vadd.f32 %v437, %v496
    %v558 = vadd.f32 %v438, %v498
    %v559 = vadd.f32 %v439, %v500
    %v560 = vadd.f32 %v440, %v502
    %v561 = vadd.f32 %v441, %v504
    %v562 = vadd.f32 %v442, %v506
    %v563 = vadd.f32 %v443, %v508
    %v564 = vadd.f32 %v444, %v510
    %v565 = vadd.f32 %v445, %v512
    %v566 = vadd.f32 %v446, %v514
    %v567 = vadd.f32 %v447, %v516
    %v568 = vadd.f32 %v448, %v518
    %v569 = vadd.f32 %v449, %v520
    %v570 = vadd.f32 %v450, %v522
    %v571 = vmul.f32 %v547, 2.0
    %v572 = vmul.f32 %v548, 2.0
    %v573 = vmul.f32 %v549, 2.0
    %v574 = vmul.f32 %v550, 2.0
    %v575 = vmul.f32 %v551, 2.0
    %v576 = vmul.f32 %v552, 2.0
    %v577 = vmul.f32 %v553, 2.0
    %v578 = vmul.f32 %v554, 2.0
    %v579 = vmul.f32 %v555, 2.0
    %v580 = vmul.f32 %v556, 2.0
    %v581 = vmul.f32 %v557, 2.0
    %v582 = vmul.f32 %v558, 2.0
    %v583 = vmul.f32 %v559, 2.0
    %v584 = vmul.f32 %v560, 2.0
    %v585 = vmul.f32 %v561, 2.0
    %v586 = vmul.f32 %v562, 2.0
    %v587 = vmul.f32 %v563, 2.0
    %v588 = vmul.f32 %v564, 2.0
    %v589 = vmul.f32 %v565, 2.0
    %v590 = vmul.f32 %v566, 2.0
    %v591 = vmul.f32 %v567, 2.0
    %v592 = vmul.f32 %v568, 2.0
    %v593 = vmul.f32 %v569, 2.0
    %v594 = vmul.f32 %v570, 2.0
    %vm619 = vcmask 1046528
    %v620 = vrot.slane %v571, 1
    %v621 = vrot.slane %v572, 1
    %v622 = vsel %vm619, %v620, %v621
    %v623 = vrot.slane %v573, 1
    %v624 = vsel %vm619, %v621, %v623
    %v625 = vrot.slane %v574, 1
    %v626 = vrot.slane %v575, 1
    %v627 = vsel %vm619, %v625, %v626
    %v628 = vrot.slane %v576, 1
    %v629 = vsel %vm619, %v626, %v628
    %v630 = vrot.slane %v577, 1
    %v631 = vrot.slane %v578, 1
    %v632 = vsel %vm619, %v630, %v631
    %v633 = vrot.slane %v579, 1
    %v634 = vsel %vm619, %v631, %v633
    %v635 = vrot.slane %v580, 1
    %v636 = vrot.slane %v581, 1
    %v637 = vsel %vm619, %v635, %v636
    %v638 = vrot.slane %v582, 1
    %v639 = vsel %vm619, %v636, %v638
    %v640 = vrot.slane %v583, 1
    %v641 = vrot.slane %v584, 1
    %v642 = vsel %vm619, %v640, %v641
    %v643 = vrot.slane %v585, 1
    %v644 = vsel %vm619, %v641, %v643
    %v645 = vrot.slane %v586, 1
    %v646 = vrot.slane %v587, 1
    %v647 = vsel %vm619, %v645, %v646
    %v648 = vrot.slane %v588, 1
    %v649 = vsel %vm619, %v646, %v648
    %v650 = vrot.slane %v589, 1
    %v651 = vrot.slane %v590, 1
    %v652 = vsel %vm619, %v650, %v651
    %v653 = vrot.slane %v591, 1
    %v654 = vsel %vm619, %v651, %v653
    %v655 = vrot.slane %v592, 1
    %v656 = vrot.slane %v593, 1
    %v657 = vsel %vm619, %v655, %v656
    %v658 = vrot.slane %v594, 1
    %v659 = vsel %vm619, %v656, %v658
    %v676 = vadd.f32 %v547, %v622
    %v677 = vadd.f32 %v548, %v624
    %v678 = vadd.f32 %v550, %v627
    %v679 = vadd.f32 %v551, %v629
    %v680 = vadd.f32 %v553, %v632
    %v681 = vadd.f32 %v554, %v634
    %v682 = vadd.f32 %v556, %v637
    %v683 = vadd.f32 %v557, %v639
    %v684 = vadd.f32 %v559, %v642
    %v685 = vadd.f32 %v560, %v644
    %v686 = vadd.f32 %v562, %v647
    %v687 = vadd.f32 %v563, %v649
    %v688 = vadd.f32 %v565, %v652
    %v689 = vadd.f32 %v566, %v654
    %v690 = vadd.f32 %v568, %v657
    %v691 = vadd.f32 %v569, %v659
    %vm716 = vcmask 1045504
    %v717 = vrot.slane %v547, 2
    %v718 = vrot.slane %v548, 2
    %v719 = vsel %vm716, %v717, %v718
    %v720 = vrot.slane %v549, 2
    %v721 = vsel %vm716, %v718, %v720
    %v722 = vrot.slane %v550, 2
    %v723 = vrot.slane %v551, 2
    %v724 = vsel %vm716, %v722, %v723
    %v725 = vrot.slane %v552, 2
    %v726 = vsel %vm716, %v723, %v725
    %v727 = vrot.slane %v553, 2
    %v728 = vrot.slane %v554, 2
    %v729 = vsel %vm716, %v727, %v728
    %v730 = vrot.slane %v555, 2
    %v731 = vsel %vm716, %v728, %v730
    %v732 = vrot.slane %v556, 2
    %v733 = vrot.slane %v557, 2
    %v734 = vsel %vm716, %v732, %v733
    %v735 = vrot.slane %v558, 2
    %v736 = vsel %vm716, %v733, %v735
    %v737 = vrot.slane %v559, 2
    %v738 = vrot.slane %v560, 2
    %v739 = vsel %vm716, %v737, %v738
    %v740 = vrot.slane %v561, 2
    %v741 = vsel %vm716, %v738, %v740
    %v742 = vrot.slane %v562, 2
    %v743 = vrot.slane %v563, 2
    %v744 = vsel %vm716, %v742, %v743
    %v745 = vrot.slane %v564, 2
    %v746 = vsel %vm716, %v743, %v745
    %v747 = vrot.slane %v565, 2
    %v748 = vrot.slane %v566, 2
    %v749 = vsel %vm716, %v747, %v748
    %v750 = vrot.slane %v567, 2
    %v751 = vsel %vm716, %v748, %v750
    %v752 = vrot.slane %v568, 2
    %v753 = vrot.slane %v569, 2
    %v754 = vsel %vm716, %v752, %v753
    %v755 = vrot.slane %v570, 2
    %v756 = vsel %vm716, %v753, %v755
    %v773 = vadd.f32 %v676, %v719
    %v774 = vadd.f32 %v677, %v721
    %v775 = vadd.f32 %v678, %v724
    %v776 = vadd.f32 %v679, %v726
    %v777 = vadd.f32 %v680, %v729
    %v778 = vadd.f32 %v681, %v731
    %v779 = vadd.f32 %v682, %v734
    %v780 = vadd.f32 %v683, %v736
    %v781 = vadd.f32 %v684, %v739
    %v782 = vadd.f32 %v685, %v741
    %v783 = vadd.f32 %v686, %v744
    %v784 = vadd.f32 %v687, %v746
    %v785 = vadd.f32 %v688, %v749
    %v786 = vadd.f32 %v689, %v751
    %v787 = vadd.f32 %v690, %v754
    %v788 = vadd.f32 %v691, %v756
    %v789 = vmul.f32 %v773, 0.0625
    %v790 = vmul.f32 %v774, 0.0625
    %v791 = vmul.f32 %v775, 0.0625
    %v792 = vmul.f32 %v776, 0.0625
    %v793 = vmul.f32 %v777, 0.0625
    %v794 = vmul.f32 %v778, 0.0625
    %v795 = vmul.f32 %v779, 0.0625
    %v796 = vmul.f32 %v780, 0.0625
    %v797 = vmul.f32 %v781, 0.0625
    %v798 = vmul.f32 %v782, 0.0625
    %v799 = vmul.f32 %v783, 0.0625
    %v800 = vmul.f32 %v784, 0.0625
    %v801 = vmul.f32 %v785, 0.0625
    %v802 = vmul.f32 %v786, 0.0625
    %v803 = vmul.f32 %v787, 0.0625
    %v804 = vmul.f32 %v788, 0.0625
    %v805 = vcombine.low %v789, %v793
    %v806 = vcombine.high %v789, %v793
    %v808 = vunpack.c.l.s4 1983009808
    %v809 = vunpack.c.0.s8 %v808
    %v810 = vlaneseq
    %v811 = vshrl.u32 %v810, 7
    %v812 = vsub.s32 %v809, %v811
    %v813 = vrot.slane %v805, %v812
    %v815 = vunpack.c.l.s4 1983009808
    %v816 = vunpack.c.0.s8 %v815
    %v817 = vlaneseq
    %v818 = vshrl.u32 %v817, 7
    %v819 = vsub.s32 %v816, %v818
    %v820 = vrot.slane %v806, %v819
    %v821 = vcombine.low %v791, %v795
    %v822 = vcombine.high %v791, %v795
    %v824 = vunpack.c.l.s4 1983009808
    %v825 = vunpack.c.0.s8 %v824
    %v826 = vlaneseq
    %v827 = vshrl.u32 %v826, 7
    %v828 = vsub.s32 %v825, %v827
    %v829 = vrot.slane %v821, %v828
    %v831 = vunpack.c.l.s4 1983009808
    %v832 = vunpack.c.0.s8 %v831
    %v833 = vlaneseq
    %v834 = vshrl.u32 %v833, 7
    %v835 = vsub.s32 %v832, %v834
    %v836 = vrot.slane %v822, %v835
    %v837 = vcombine.low %v797, %v801
    %v838 = vcombine.high %v797, %v801
    %v840 = vunpack.c.l.s4 1983009808
    %v841 = vunpack.c.0.s8 %v840
    %v842 = vlaneseq
    %v843 = vshrl.u32 %v842, 7
    %v844 = vsub.s32 %v841, %v843
    %v845 = vrot.slane %v837, %v844
    %v847 = vunpack.c.l.s4 1983009808
    %v848 = vunpack.c.0.s8 %v847
    %v849 = vlaneseq
    %v850 = vshrl.u32 %v849, 7
    %v851 = vsub.s32 %v848, %v850
    %v852 = vrot.slane %v838, %v851
    %v853 = vcombine.low %v799, %v803
    %v854 = vcombine.high %v799, %v803
    %v856 = vunpack.c.l.s4 1983009808
    %v857 = vunpack.c.0.s8 %v856
    %v858 = vlaneseq
    %v859 = vshrl.u32 %v858, 7
    %v860 = vsub.s32 %v857, %v859
    %v861 = vrot.slane %v853, %v860
    %v863 = vunpack.c.l.s4 1983009808
    %v864 = vunpack.c.0.s8 %v863
    %v865 = vlaneseq
    %v866 = vshrl.u32 %v865, 7
    %v867 = vsub.s32 %v864, %v866
    %v868 = vrot.slane %v854, %v867
    %v869 = vcombine.low %v813, %v829
    %v870 = vcombine.high %v813, %v829
    %v872 = vunpack.c.l.s4 1934713408
    %v873 = vunpack.c.0.s8 %v872
    %v874 = vlaneseq
    %v875 = vshrl.u32 %v874, 7
    %v876 = vsub.s32 %v873, %v875
    %v877 = vrot.slane %v869, %v876
    %v879 = vunpack.c.l.s4 1934713408
    %v880 = vunpack.c.0.s8 %v879
    %v881 = vlaneseq
    %v882 = vshrl.u32 %v881, 7
    %v883 = vsub.s32 %v880, %v882
    %v884 = vrot.slane %v870, %v883
    %v885 = vcombine.low %v820, %v836
    %v886 = vcombine.high %v820, %v836
    %v888 = vunpack.c.l.s4 1934713408
    %v889 = vunpack.c.0.s8 %v888
    %v890 = vlaneseq
    %v891 = vshrl.u32 %v890, 7
    %v892 = vsub.s32 %v889, %v891
    %v893 = vrot.slane %v885, %v892
    %v895 = vunpack.c.l.s4 1934713408
    %v896 = vunpack.c.0.s8 %v895
    %v897 = vlaneseq
    %v898 = vshrl.u32 %v897, 7
    %v899 = vsub.s32 %v896, %v898
    %v900 = vrot.slane %v886, %v899
    %v901 = vcombine.low %v845, %v861
    %v902 = vcombine.high %v845, %v861
    %v904 = vunpack.c.l.s4 1934713408
    %v905 = vunpack.c.0.s8 %v904
    %v906 = vlaneseq
    %v907 = vshrl.u32 %v906, 7
    %v908 = vsub.s32 %v905, %v907
    %v909 = vrot.slane %v901, %v908
    %v911 = vunpack.c.l.s4 1934713408
    %v912 = vunpack.c.0.s8 %v911
    %v913 = vlaneseq
    %v914 = vshrl.u32 %v913, 7
    %v915 = vsub.s32 %v912, %v914
    %v916 = vrot.slane %v902, %v915
    %v917 = vcombine.low %v852, %v868
    %v918 = vcombine.high %v852, %v868
    %v920 = vunpack.c.l.s4 1934713408
    %v921 = vunpack.c.0.s8 %v920
    %v922 = vlaneseq
    %v923 = vshrl.u32 %v922, 7
    %v924 = vsub.s32 %v921, %v923
    %v925 = vrot.slane %v917, %v924
    %v927 = vunpack.c.l.s4 1934713408
    %v928 = vunpack.c.0.s8 %v927
    %v929 = vlaneseq
    %v930 = vshrl.u32 %v929, 7
    %v931 = vsub.s32 %v928, %v930
    %v932 = vrot.slane %v918, %v931
    %v933 = vcombine.low %v877, %v909
    %v934 = vcombine.high %v877, %v909
    %v935 = vcombine.low %v884, %v916
    %v936 = vcombine.high %v884, %v916
    %v937 = vcombine.low %v893, %v925
    %v938 = vcombine.high %v893, %v925
    %v939 = vcombine.low %v900, %v932
    %v940 = vcombine.high %v900, %v932
    %v941 = vcombine.low %v790, %v794
    %v942 = vcombine.high %v790, %v794
    %v944 = vunpack.c.l.s4 1983009808
    %v945 = vunpack.c.0.s8 %v944
    %v946 = vlaneseq
    %v947 = vshrl.u32 %v946, 7
    %v948 = vsub.s32 %v945, %v947
    %v949 = vrot.slane %v941, %v948
    %v951 = vunpack.c.l.s4 1983009808
    %v952 = vunpack.c.0.s8 %v951
    %v953 = vlaneseq
    %v954 = vshrl.u32 %v953, 7
    %v955 = vsub.s32 %v952, %v954
    %v956 = vrot.slane %v942, %v955
    %v957 = vcombine.low %v792, %v796
    %v958 = vcombine.high %v792, %v796
    %v960 = vunpack.c.l.s4 1983009808
    %v961 = vunpack.c.0.s8 %v960
    %v962 = vlaneseq
    %v963 = vshrl.u32 %v962, 7
    %v964 = vsub.s32 %v961, %v963
    %v965 = vrot.slane %v957, %v964
    %v967 = vunpack.c.l.s4 1983009808
    %v968 = vunpack.c.0.s8 %v967
    %v969 = vlaneseq
    %v970 = vshrl.u32 %v969, 7
    %v971 = vsub.s32 %v968, %v970
    %v972 = vrot.slane %v958, %v971
    %v973 = vcombine.low %v798, %v802
    %v974 = vcombine.high %v798, %v802
    %v976 = vunpack.c.l.s4 1983009808
    %v977 = vunpack.c.0.s8 %v976
    %v978 = vlaneseq
    %v979 = vshrl.u32 %v978, 7
    %v980 = vsub.s32 %v977, %v979
    %v981 = vrot.slane %v973, %v980
    %v983 = vunpack.c.l.s4 1983009808
    %v984 = vunpack.c.0.s8 %v983
    %v985 = vlaneseq
    %v986 = vshrl.u32 %v985, 7
    %v987 = vsub.s32 %v984, %v986
    %v988 = vrot.slane %v974, %v987
    %v989 = vcombine.low %v800, %v804
    %v990 = vcombine.high %v800, %v804
    %v992 = vunpack.c.l.s4 1983009808
    %v993 = vunpack.c.0.s8 %v992
    %v994 = vlaneseq
    %v995 = vshrl.u32 %v994, 7
    %v996 = vsub.s32 %v993, %v995
    %v997 = vrot.slane %v989, %v996
    %v999 = vunpack.c.l.s4 1983009808
    %v1000 = vunpack.c.0.s8 %v999
    %v1001 = vlaneseq
    %v1002 = vshrl.u32 %v1001, 7
    %v1003 = vsub.s32 %v1000, %v1002
    %v1004 = vrot.slane %v990, %v1003
    %v1005 = vcombine.low %v949, %v965
    %v1006 = vcombine.high %v949, %v965
    %v1008 = vunpack.c.l.s4 1934713408
    %v1009 = vunpack.c.0.s8 %v1008
    %v1010 = vlaneseq
    %v1011 = vshrl.u32 %v1010, 7
    %v1012 = vsub.s32 %v1009, %v1011
    %v1013 = vrot.slane %v1005, %v1012
    %v1015 = vunpack.c.l.s4 1934713408
    %v1016 = vunpack.c.0.s8 %v1015
    %v1017 = vlaneseq
    %v1018 = vshrl.u32 %v1017, 7
    %v1019 = vsub.s32 %v1016, %v1018
    %v1020 = vrot.slane %v1006, %v1019
    %v1021 = vcombine.low %v956, %v972
    %v1022 = vcombine.high %v956, %v972
    %v1024 = vunpack.c.l.s4 1934713408
    %v1025 = vunpack.c.0.s8 %v1024
    %v1026 = vlaneseq
    %v1027 = vshrl.u32 %v1026, 7
    %v1028 = vsub.s32 %v1025, %v1027
    %v1029 = vrot.slane %v1021, %v1028
    %v1031 = vunpack.c.l.s4 1934713408
    %v1032 = vunpack.c.0.s8 %v1031
    %v1033 = vlaneseq
    %v1034 = vshrl.u32 %v1033, 7
    %v1035 = vsub.s32 %v1032, %v1034
    %v1036 = vrot.slane %v1022, %v1035
    %v1037 = vcombine.low %v981, %v997
    %v1038 = vcombine.high %v981, %v997
    %v1040 = vunpack.c.l.s4 1934713408
    %v1041 = vunpack.c.0.s8 %v1040
    %v1042 = vlaneseq
    %v1043 = vshrl.u32 %v1042, 7
    %v1044 = vsub.s32 %v1041, %v1043
    %v1045 = vrot.slane %v1037, %v1044
    %v1047 = vunpack.c.l.s4 1934713408
    %v1048 = vunpack.c.0.s8 %v1047
    %v1049 = vlaneseq
    %v1050 = vshrl.u32 %v1049, 7
    %v1051 = vsub.s32 %v1048, %v1050
    %v1052 = vrot.slane %v1038, %v1051
    %v1053 = vcombine.low %v988, %v1004
    %v1054 = vcombine.high %v988, %v1004
    %v1056 = vunpack.c.l.s4 1934713408
    %v1057 = vunpack.c.0.s8 %v1056
    %v1058 = vlaneseq
    %v1059 = vshrl.u32 %v1058, 7
    %v1060 = vsub.s32 %v1057, %v1059
    %v1061 = vrot.slane %v1053, %v1060
    %v1063 = vunpack.c.l.s4 1934713408
    %v1064 = vunpack.c.0.s8 %v1063
    %v1065 = vlaneseq
    %v1066 = vshrl.u32 %v1065, 7
    %v1067 = vsub.s32 %v1064, %v1066
    %v1068 = vrot.slane %v1054, %v1067
    %v1069 = vcombine.low %v1013, %v1045
    %v1070 = vcombine.high %v1013, %v1045
    %v1071 = vcombine.low %v1020, %v1052
    %v1072 = vcombine.high %v1020, %v1052
    %v1073 = vcombine.low %v1029, %v1061
    %v1074 = vcombine.high %v1029, %v1061
    %v1075 = vcombine.low %v1036, %v1068
    %v1076 = vcombine.high %v1036, %v1068
    %1078 = vrot.lane.b32.xlu0 %v934, 16
    %v1079 = vpop.permute.xlu0 %1078
    %1082 = vrot.lane.b32.xlu0 %v935, 32
    %v1083 = vpop.permute.xlu0 %1082
    %1086 = vrot.lane.b32.xlu0 %v936, 48
    %v1087 = vpop.permute.xlu0 %1086
    %1090 = vrot.lane.b32.xlu0 %v937, 64
    %v1091 = vpop.permute.xlu0 %1090
    %1094 = vrot.lane.b32.xlu0 %v938, 80
    %v1095 = vpop.permute.xlu0 %1094
    %1098 = vrot.lane.b32.xlu0 %v939, 96
    %v1099 = vpop.permute.xlu0 %1098
    %1102 = vrot.lane.b32.xlu0 %v940, 112
    %v1103 = vpop.permute.xlu0 %1102
    %1106 = vrot.lane.b32.xlu0 %v1070, 16
    %v1107 = vpop.permute.xlu0 %1106
    %1110 = vrot.lane.b32.xlu0 %v1071, 32
    %v1111 = vpop.permute.xlu0 %1110
    %1114 = vrot.lane.b32.xlu0 %v1072, 48
    %v1115 = vpop.permute.xlu0 %1114
    %1118 = vrot.lane.b32.xlu0 %v1073, 64
    %v1119 = vpop.permute.xlu0 %1118
    %1122 = vrot.lane.b32.xlu0 %v1074, 80
    %v1123 = vpop.permute.xlu0 %1122
    %1126 = vrot.lane.b32.xlu0 %v1075, 96
    %v1127 = vpop.permute.xlu0 %1126
    %1130 = vrot.lane.b32.xlu0 %v1076, 112
    %v1131 = vpop.permute.xlu0 %1130
    %vm1133 = vcmask 130048
    %v1134 = vsel %vm1133, %v933, %v1079
    %vm1135 = vcmask 261120
    %v1136 = vsel %vm1135, %v1134, %v1083
    %vm1137 = vcmask 392192
    %v1138 = vsel %vm1137, %v1136, %v1087
    %vm1139 = vcmask 523264
    %v1140 = vsel %vm1139, %v1138, %v1091
    %vm1141 = vcmask 654336
    %v1142 = vsel %vm1141, %v1140, %v1095
    %vm1143 = vcmask 785408
    %v1144 = vsel %vm1143, %v1142, %v1099
    %vm1145 = vcmask 916480
    %v1146 = vsel %vm1145, %v1144, %v1103
    %v1147 = vsel %vm1133, %v1069, %v1107
    %v1148 = vsel %vm1135, %v1147, %v1111
    %v1149 = vsel %vm1137, %v1148, %v1115
    %v1150 = vsel %vm1139, %v1149, %v1119
    %v1151 = vsel %vm1141, %v1150, %v1123
    %v1152 = vsel %vm1143, %v1151, %v1127
    %v1153 = vsel %vm1145, %v1152, %v1131
    %1154 = vst [vmem:[#allocation6] sm:$0xff] %v1146
    %1155 = vst [vmem:[#allocation6 + $0x8] sm:$0xff] %v1153
    // Predicated region
    $region10: #{tpu_custom_call.1} parent=1 // pred_check
      _
    $region11: #{tpu_custom_call.1} parent=1 // pred_check_branch
      %1157 = sbr.rel (0) target = $region13
    $region12: #{tpu_custom_call.1} parent=1 // pred_region
      %s1159 = ssub.s32 256, 256
      %1160 = vsyncadd [#allocation5], %s1159
      %s1162 = sshll.u32 [#allocation6], 4
      %s1163 = int_to_ptr.vmem [resolvable:$true] %s1162
      %1165 = dma.vmem_to_hbm [thread:$0]  %s1163, 256, %s1, [#allocation5]
    $region13: #{tpu_custom_call.1} parent=1 // pred_fallthru
      _
    // Predicated region
    $region14: #{tpu_custom_call.1} parent=1 // pred_check
      _
    $region15: #{tpu_custom_call.1} parent=1 // pred_check_branch
      %1167 = sbr.rel (0) target = $region17
    $region16: #{tpu_custom_call.1} parent=1 // pred_region
      %1168 = dma.done [#allocation5], 256
    $region17: #{tpu_custom_call.1} parent=1 // pred_fallthru
      _
    %1169 = vsyncpa [#allocation4], 1
    %1170 = vsyncpa [#allocation5], 1

</llo_original>
